<compile_context>
chip_gen: v7x
topology: tpu7x:2x2x1
jax: 0.10.0
libtpu: 0.0.40
codegen_flags: <defaults>
</compile_context>

<pallas_src>
import functools

import jax
import jax.numpy as jnp
from jax.experimental import pallas as pl
from jax.experimental.pallas import tpu as pltpu


def _round_up(x, m):
    return ((x + m - 1) // m) * m


# ------------------------- Kernel 1: H = X @ W^T -----------------------------
def linear_kernel(x_ref, wt_ref, h_ref):
    # x_ref: (TM, CP) f32, wt_ref: (CP, CP) f32 (resident), h_ref: (TM, CP) bf16
    h_ref[...] = jnp.dot(
        x_ref[...], wt_ref[...], preferred_element_type=jnp.float32
    ).astype(h_ref.dtype)


# ------------------ Kernel 2: row-tiled propagate + epilogue ------------------
def propagate_kernel(a_ref, h_ref, b_ref, x_ref, o_ref):
    # a_ref: (TM, NP) bf16 adjacency row slab (streamed / pipelined)
    # h_ref: (NP, CP) bf16 transformed features (resident)
    # b_ref: (1, CP) f32 bias, x_ref: (TM, CP) f32 residual, o_ref: (TM, CP) f32
    out = jnp.dot(a_ref[...], h_ref[...], preferred_element_type=jnp.float32)
    out = out + b_ref[...]                       # GCNConv bias (added after propagate)
    out = jnp.maximum(out, 0.0)                  # ReLU
    # TODO(synk): training-mode dropout (stochastic mask via pltpu.prng_*) not
    # emulated; inference-mode dropout is the identity.
    # F.normalize: x / max(||x||_2, 1e-12).  rsqrt runs on the EUP slot.
    sq = jnp.sum(out * out, axis=-1, keepdims=True)
    out = out * jax.lax.rsqrt(jnp.maximum(sq, 1e-24))
    o_ref[...] = ((out + x_ref[...]) * 0.5).astype(o_ref.dtype)   # residual average


# --------------------------------- wrapper ------------------------------------
@functools.partial(jax.jit, static_argnames=("row_tile",))
def resgcn_block(x, w, b, a_hat, *, row_tile=256):
    """x: [N, C] f32, w: [C, C] (PyG [out, in]), b: [C], a_hat: [N, N] dense gcn_norm adjacency."""
    n, c = x.shape
    adj_dtype = jnp.bfloat16                 # bf16 stream for A_hat / H, f32 accumulate
    f32 = jnp.float32

    cp = _round_up(max(c, 1), 128)           # lane-dense channel dim
    tm = _round_up(min(row_tile, n), 16)     # row tile (mult. of 16 for bf16 sublane packing)
    np_ = _round_up(n, tm)                   # padded node count (mult. of the row tile)

    # Zero-padding keeps semantics exact: padded channels/rows contribute zeros.
    x_p = jnp.zeros((np_, cp), f32).at[:n, :c].set(x.astype(f32))
    wt_p = jnp.zeros((cp, cp), f32).at[:c, :c].set(w.astype(f32).T)
    b_p = jnp.zeros((1, cp), f32).at[0, :c].set(b.astype(f32))
    a_p = jnp.zeros((np_, np_), adj_dtype).at[:n, :n].set(a_hat.astype(adj_dtype))

    grid = (np_ // tm,)

    # --- Kernel 1: H = X @ W^T, computed exactly once (not per A_hat tile). ---
    h = pl.pallas_call(
        linear_kernel,
        out_shape=jax.ShapeDtypeStruct((np_, cp), adj_dtype),
        grid_spec=pltpu.PrefetchScalarGridSpec(
            num_scalar_prefetch=0,
            grid=grid,
            in_specs=[
                pl.BlockSpec((tm, cp), lambda i: (i, 0)),   # X row tile
                pl.BlockSpec((cp, cp), lambda i: (0, 0)),   # W^T (resident)
            ],
            out_specs=pl.BlockSpec((tm, cp), lambda i: (i, 0)),
        ),
        compiler_params=pltpu.CompilerParams(
            dimension_semantics=("parallel",)),
    )(x_p, wt_p)

    # --- Kernel 2: out = epilogue(A_hat @ H + b), A_hat streamed row-slab-wise. ---
    # VMEM budget at tm=256, N<=8k: 2 x (tm*np_*2B) A slabs + np_*cp*2B resident H
    # + f32 x/out tiles  ~= 10 MiB  << 32 MiB scoped default (v6e/v7x).
    out_p = pl.pallas_call(
        propagate_kernel,
        out_shape=jax.ShapeDtypeStruct((np_, cp), f32),
        grid_spec=pltpu.PrefetchScalarGridSpec(
            num_scalar_prefetch=0,
            grid=grid,
            in_specs=[
                pl.BlockSpec((tm, np_), lambda i: (i, 0)),  # A_hat row slab (streamed)
                pl.BlockSpec((np_, cp), lambda i: (0, 0)),  # H (resident across tiles)
                pl.BlockSpec((1, cp), lambda i: (0, 0)),    # bias (resident)
                pl.BlockSpec((tm, cp), lambda i: (i, 0)),   # residual X tile
            ],
            out_specs=pl.BlockSpec((tm, cp), lambda i: (i, 0)),
        ),
        compiler_params=pltpu.CompilerParams(
            dimension_semantics=("parallel",),     # tiles independent -> megacore-shardable
            vmem_limit_bytes=64 * 1024 * 1024),
    )(a_p, h, b_p, x_p)

    return out_p[:n, :c].astype(x.dtype)


# ----------------------------- Glue (plain JAX) ------------------------------
def gcn_norm_dense(edge_index, edge_weight, num_nodes):
    """Dense A_hat per PyG gcn_norm: add self loops (weight 1.0), symmetric D^-1/2 norm."""
    src = edge_index[0]
    dst = edge_index[1]
    loop = jnp.arange(num_nodes, dtype=src.dtype)
    src = jnp.concatenate([src, loop])
    dst = jnp.concatenate([dst, loop])
    ew = jnp.concatenate([edge_weight, jnp.ones((num_nodes,), edge_weight.dtype)])

    deg = jnp.zeros((num_nodes,), jnp.float32).at[dst].add(ew)
    dinv = jnp.where(deg > 0, 1.0 / jnp.sqrt(deg), 0.0)
    norm = dinv[src] * ew * dinv[dst]

    # out[target] += norm * h[source]  =>  A_hat[target, source] = norm
    a = jnp.zeros((num_nodes, num_nodes), jnp.float32).at[dst, src].add(norm)
    return a


def reference_bf16(x, w, b, a_hat):
    """Reference matching the kernel's bf16 streaming / f32 accumulation path."""
    h = (x @ w.T).astype(jnp.bfloat16)
    out = jnp.dot(a_hat.astype(jnp.bfloat16), h, preferred_element_type=jnp.float32)
    out = out + b[None, :]
    out = jnp.maximum(out, 0.0)
    nrm = jnp.sqrt(jnp.sum(out * out, axis=-1, keepdims=True))
    out = out / jnp.maximum(nrm, 1e-12)
    return (out + x) * 0.5


def reference_f32(x, w, b, a_hat):
    out = a_hat @ (x @ w.T) + b[None, :]
    out = jnp.maximum(out, 0.0)
    nrm = jnp.sqrt(jnp.sum(out * out, axis=-1, keepdims=True))
    out = out / jnp.maximum(nrm, 1e-12)
    return (out + x) * 0.5


if __name__ == "__main__":
    key = jax.random.PRNGKey(0)
    k_x, k_w, k_b, k_ew = jax.random.split(key, 4)

    N = 256         # graph nodes (row_tile=128 below -> 2-step pipelined grid)
    C = 32          # in_channels == out_channels (GCNConv(in, in))

    # Deterministic ring graph (both directions), E = 2*N edges.
    idx = jnp.arange(N, dtype=jnp.int32)
    src = jnp.concatenate([idx, (idx + 1) % N])
    dst = jnp.concatenate([(idx + 1) % N, idx])
    edge_index = jnp.stack([src, dst], axis=0)                 # [2, 2N]
    edge_weight = jax.random.uniform(k_ew, (2 * N,), jnp.float32, 0.5, 1.5)

    # Node features and GCNConv parameters (glorot-ish deterministic init).
    x = jax.random.normal(k_x, (N, C), jnp.float32)
    w = jax.random.normal(k_w, (C, C), jnp.float32) * (1.0 / jnp.sqrt(C))
    b = jax.random.normal(k_b, (C,), jnp.float32) * 0.1

    a_hat = gcn_norm_dense(edge_index, edge_weight, N)

    out = resgcn_block(x, w, b, a_hat, row_tile=128)
    out = jax.block_until_ready(out)

    ref_b = reference_bf16(x, w, b, a_hat)
    ref_f = reference_f32(x, w, b, a_hat)
    assert out.shape == (N, C)
    # Kernel logic check (same bf16 stream / f32 accumulate as the kernel).
    assert jnp.max(jnp.abs(out - ref_b)) < 2e-2, float(jnp.max(jnp.abs(out - ref_b)))
    # Sanity vs. full-f32 math (bf16 adjacency stream trades ~1e-2-level accuracy).
    assert jnp.max(jnp.abs(out - ref_f)) < 5e-2, float(jnp.max(jnp.abs(out - ref_f)))

    print("KERNEL_OK")
</pallas_src>

<mosaic_0001>
module attributes {stable_mosaic.version = 11 : i64} {
  func.func @propagate_kernel(%arg0: i32, %arg1: memref<128x256xbf16, #tpu.memory_space<vmem>>, %arg2: memref<256x128xbf16, #tpu.memory_space<vmem>>, %arg3: memref<1x128xf32, #tpu.memory_space<vmem>>, %arg4: memref<128x128xf32, #tpu.memory_space<vmem>>, %arg5: memref<128x128xf32, #tpu.memory_space<vmem>>) attributes {dimension_semantics = [#tpu.dimension_semantics<parallel>], iteration_bounds = array<i64: 2>, scalar_prefetch = 0 : i64, scratch_operands = 0 : i64, tpu.core_type = #tpu.core_type<tc>, window_params = [{transform_indices = @transform_0, window_bounds = array<i64: 128, 256>}, {pipeline_mode = #tpu.pipeline_mode<synchronous>, transform_indices = @transform_1, window_bounds = array<i64: 256, 128>}, {pipeline_mode = #tpu.pipeline_mode<synchronous>, transform_indices = @transform_2, window_bounds = array<i64: 1, 128>}, {transform_indices = @transform_3, window_bounds = array<i64: 128, 128>}, {transform_indices = @transform_4, window_bounds = array<i64: 128, 128>}]} {
    %c0 = arith.constant 0 : index
    %c0_0 = arith.constant 0 : index
    %0 = vector.load %arg1[%c0, %c0_0] : memref<128x256xbf16, #tpu.memory_space<vmem>>, vector<128x256xbf16>
    %c0_1 = arith.constant 0 : index
    %c0_2 = arith.constant 0 : index
    %1 = vector.load %arg2[%c0_1, %c0_2] : memref<256x128xbf16, #tpu.memory_space<vmem>>, vector<256x128xbf16>
    %cst = arith.constant dense<0.000000e+00> : vector<128x128xf32>
    %2 = tpu.matmul %0, %1, %cst {dimension_numbers = #tpu.dot_dimension_numbers<[1], [0], [0], [1], [0, 0, 1, 1], [], []>} : vector<128x256xbf16>, vector<256x128xbf16>, vector<128x128xf32> -> vector<128x128xf32>
    %c0_3 = arith.constant 0 : index
    %c0_4 = arith.constant 0 : index
    %3 = vector.load %arg3[%c0_3, %c0_4] : memref<1x128xf32, #tpu.memory_space<vmem>>, vector<1x128xf32>
    %4 = vector.broadcast %3 : vector<1x128xf32> to vector<128x128xf32>
    %5 = arith.addf %2, %4 : vector<128x128xf32>
    %cst_5 = arith.constant 0.000000e+00 : f32
    %6 = vector.broadcast %cst_5 : f32 to vector<128x128xf32>
    %7 = arith.maximumf %5, %6 : vector<128x128xf32>
    %8 = arith.mulf %7, %7 : vector<128x128xf32>
    %cst_6 = arith.constant dense<0.000000e+00> : vector<128xf32>
    %9 = vector.multi_reduction <add>, %8, %cst_6 [1] : vector<128x128xf32> to vector<128xf32>
    %10 = vector.shape_cast %9 : vector<128xf32> to vector<128x1xf32>
    %cst_7 = arith.constant 1.000000e-24 : f32
    %11 = vector.broadcast %cst_7 : f32 to vector<128x1xf32>
    %12 = arith.maximumf %10, %11 : vector<128x1xf32>
    %13 = math.rsqrt %12 : vector<128x1xf32>
    %14 = vector.broadcast %13 : vector<128x1xf32> to vector<128x128xf32>
    %15 = arith.mulf %7, %14 : vector<128x128xf32>
    %c0_8 = arith.constant 0 : index
    %c0_9 = arith.constant 0 : index
    %16 = vector.load %arg4[%c0_8, %c0_9] : memref<128x128xf32, #tpu.memory_space<vmem>>, vector<128x128xf32>
    %17 = arith.addf %15, %16 : vector<128x128xf32>
    %cst_10 = arith.constant 5.000000e-01 : f32
    %18 = vector.broadcast %cst_10 : f32 to vector<128x128xf32>
    %19 = arith.mulf %17, %18 : vector<128x128xf32>
    %c0_11 = arith.constant 0 : index
    %c0_12 = arith.constant 0 : index
    %20 = vector.load %arg5[%c0_11, %c0_12] : memref<128x128xf32, #tpu.memory_space<vmem>>, vector<128x128xf32>
    tpu.vector_store %arg5[%c0_11, %c0_12], %19 {strides = array<i32>} : memref<128x128xf32, #tpu.memory_space<vmem>>, vector<128x128xf32>,
    return
  }
  func.func @transform_0(%arg0: i32) -> (i32, i32) {
    %c0_i32 = arith.constant 0 : i32
    %c0_i32_0 = arith.constant 0 : i32
    return %arg0, %c0_i32 : i32, i32
  }
  func.func @transform_1(%arg0: i32) -> (i32, i32) {
    %c0_i32 = arith.constant 0 : i32
    %c0_i32_0 = arith.constant 0 : i32
    %c0_i32_1 = arith.constant 0 : i32
    return %c0_i32, %c0_i32_0 : i32, i32
  }
  func.func @transform_2(%arg0: i32) -> (i32, i32) {
    %c0_i32 = arith.constant 0 : i32
    %c0_i32_0 = arith.constant 0 : i32
    %c0_i32_1 = arith.constant 0 : i32
    return %c0_i32, %c0_i32_0 : i32, i32
  }
  func.func @transform_3(%arg0: i32) -> (i32, i32) {
    %c0_i32 = arith.constant 0 : i32
    %c0_i32_0 = arith.constant 0 : i32
    return %arg0, %c0_i32 : i32, i32
  }
  func.func @transform_4(%arg0: i32) -> (i32, i32) {
    %c0_i32 = arith.constant 0 : i32
    %c0_i32_0 = arith.constant 0 : i32
    return %arg0, %c0_i32 : i32, i32
  }
}

module attributes {stable_mosaic.version = 11 : i64} {
  func.func @linear_kernel(%arg0: i32, %arg1: memref<128x128xf32, #tpu.memory_space<vmem>>, %arg2: memref<128x128xf32, #tpu.memory_space<vmem>>, %arg3: memref<128x128xbf16, #tpu.memory_space<vmem>>) attributes {dimension_semantics = [#tpu.dimension_semantics<parallel>], iteration_bounds = array<i64: 2>, scalar_prefetch = 0 : i64, scratch_operands = 0 : i64, tpu.core_type = #tpu.core_type<tc>, window_params = [{transform_indices = @transform_0, window_bounds = array<i64: 128, 128>}, {pipeline_mode = #tpu.pipeline_mode<synchronous>, transform_indices = @transform_1, window_bounds = array<i64: 128, 128>}, {transform_indices = @transform_2, window_bounds = array<i64: 128, 128>}]} {
    %c0 = arith.constant 0 : index
    %c0_0 = arith.constant 0 : index
    %0 = vector.load %arg1[%c0, %c0_0] : memref<128x128xf32, #tpu.memory_space<vmem>>, vector<128x128xf32>
    %c0_1 = arith.constant 0 : index
    %c0_2 = arith.constant 0 : index
    %1 = vector.load %arg2[%c0_1, %c0_2] : memref<128x128xf32, #tpu.memory_space<vmem>>, vector<128x128xf32>
    %cst = arith.constant dense<0.000000e+00> : vector<128x128xf32>
    %2 = tpu.matmul %0, %1, %cst {dimension_numbers = #tpu.dot_dimension_numbers<[1], [0], [0], [1], [0, 0, 1, 1], [], []>} : vector<128x128xf32>, vector<128x128xf32>, vector<128x128xf32> -> vector<128x128xf32>
    %3 = arith.truncf %2 : vector<128x128xf32> to vector<128x128xbf16>
    %c0_3 = arith.constant 0 : index
    %c0_4 = arith.constant 0 : index
    %4 = vector.load %arg3[%c0_3, %c0_4] : memref<128x128xbf16, #tpu.memory_space<vmem>>, vector<128x128xbf16>
    tpu.vector_store %arg3[%c0_3, %c0_4], %3 {strides = array<i32>} : memref<128x128xbf16, #tpu.memory_space<vmem>>, vector<128x128xbf16>,
    return
  }
  func.func @transform_0(%arg0: i32) -> (i32, i32) {
    %c0_i32 = arith.constant 0 : i32
    %c0_i32_0 = arith.constant 0 : i32
    return %arg0, %c0_i32 : i32, i32
  }
  func.func @transform_1(%arg0: i32) -> (i32, i32) {
    %c0_i32 = arith.constant 0 : i32
    %c0_i32_0 = arith.constant 0 : i32
    %c0_i32_1 = arith.constant 0 : i32
    return %c0_i32, %c0_i32_0 : i32, i32
  }
  func.func @transform_2(%arg0: i32) -> (i32, i32) {
    %c0_i32 = arith.constant 0 : i32
    %c0_i32_0 = arith.constant 0 : i32
    return %arg0, %c0_i32 : i32, i32
  }
}

</mosaic_0001>

<llo_original>
// kernel: resgcn_block.3
$region0: #{resgcn_block.3}
  #allocation0 [shape = 'u32[]', space=smem, size = 0x4, offset = 0x4, fixed_abs, tag = 'smem constant byte address 0x4 - core index']
  #allocation1 [shape = 'u32[144,128]{1,0:T(1,128)}', space=vmem, size = 0x12000, scoped, tag = 'internal scratch']
  %s0 = inlined_call_operand.hbm [shape: bf16[256,256], index: 0, kind: input, shape index: {}]
  %s1 = inlined_call_operand.hbm [shape: bf16[256,128], index: 1, kind: input, shape index: {}]
  %s2 = inlined_call_operand.hbm [shape: f32[1,128], index: 2, kind: input, shape index: {}]
  %s3 = inlined_call_operand.hbm [shape: f32[256,128], index: 3, kind: input, shape index: {}]
  %s4 = inlined_call_operand.hbm [shape: f32[256,128], index: 4, kind: output, shape index: {}]
  %s5 = sld [smem:[#allocation0]]
  $region65: #{resgcn_block.3} parent=0
    _
  %s7 = ssub.s32 1, %s5
  %s8 = scalar_select 0, %s7, %s5
  $region1: #{resgcn_block.3} parent=0
    #allocation2 [shape = 'u8[131072]{0}', space=vmem, size = 0x20000, scoped, tag = 'input window, operand 0']
    #allocation3 [shape = 's32[2]{0}', space=sflag, size = 0x8, scoped, tag = 'scoped memory for resgcn_block.3']
    #allocation4 [shape = 's32[2]{0}', space=sflag, size = 0x8, scoped, tag = 'scoped memory for resgcn_block.3']
    #allocation5 [shape = 'u8[65536]{0}', space=vmem, size = 0x10000, scoped, tag = 'input window, operand 1, single buffered']
    #allocation6 [shape = 's32[1]{0}', space=sflag, size = 0x4, scoped, tag = 'scoped memory for resgcn_block.3']
    #allocation7 [shape = 'u8[512]{0}', space=vmem, size = 0x400, scoped, tag = 'input window, operand 2, single buffered']
    #allocation8 [shape = 'u8[131072]{0}', space=vmem, size = 0x20000, scoped, tag = 'input window, operand 3']
    #allocation9 [shape = 's32[2]{0}', space=sflag, size = 0x8, scoped, tag = 'scoped memory for resgcn_block.3']
    #allocation10 [shape = 'u8[131072]{0}', space=vmem, size = 0x20000, scoped, tag = 'output window, operand 0']
    %9 = vsyncpa [#allocation3], 0
    %s10 = scalar_lea.sflag [#allocation3], 1
    %11 = vsyncpa %s10, 0
    %12 = vsyncpa [#allocation6], 0
    %13 = vsyncpa [#allocation9], 0
    %s14 = scalar_lea.sflag [#allocation9], 1
    %15 = vsyncpa %s14, 0
    %16 = vsyncpa [#allocation4], 0
    %s17 = scalar_lea.sflag [#allocation4], 1
    %18 = vsyncpa %s17, 0
    loop: start=0, step=1, limit=4
    $region2: #{resgcn_block.3} parent=1 // loop_pre_header
      _
    $region3: #{resgcn_block.3} parent=1 // loop_header
      %s20 = sphi 0, %s24
      %p21 = scmp.ge.s32.totalorder %s20, 4
      %s30 = sphi 0, %s32
      %s33 = sphi 0, %s30
      %s34 = sphi 0, %s33
      %s50 = sphi 0, %s34
      %s54 = sphi 0, %s54
      %s56 = sphi 0, %s54
      %s57 = sphi 0, %s56
      %s71 = sphi 0, %s57
      %s75 = sphi 0, %s75
      %s77 = sphi 0, %s75
      %s78 = sphi 0, %s77
      %s92 = sphi 0, %s78
      %s98 = sphi 0, %s100
      %s101 = sphi 0, %s98
      %s102 = sphi 0, %s101
      %s118 = sphi 0, %s102
      %s124 = sphi 0, %s126
      %s127 = sphi 0, %s124
      %s128 = sphi 0, %s127
      %s144 = sphi 0, %s128
    $region4: #{resgcn_block.3} parent=1 // loop_header_branch
      %23 = sbr.rel (%p21) target = $region8
    $region5: #{resgcn_block.3} parent=1 // loop_body
      %s25 = ssub.s32 %s20, 1
      %s26 = ssub.s32 %s20, 2
      %s27 = sadd.s32 %s20, 1
      %s28 = ssub.s32 %s20, %s27
      %p29 = scmp.eq.s32.totalorder %s28, 0
      %s31 = sadd.s32 %s30, 1
      %s32 = scalar_select %p29, %s30, %s31
      %p35 = pneg %p29
      %p36 = scmp.eq.s32.totalorder %s20, 1
      %p37 = por %p35, %p36
      %p38 = scmp.ne.s32.totalorder %s30, %s33
      %p39 = scmp.eq.s32.totalorder %s20, 0
      %p40 = por %p38, %p39
      %p41 = scmp.ne.s32.totalorder %s30, %s33
      %p42 = scmp.eq.s32.totalorder %s25, 1
      %p43 = por %p41, %p42
      %p44 = scmp.ne.s32.totalorder %s33, %s34
      %p45 = scmp.eq.s32.totalorder %s25, 0
      %p46 = por %p44, %p45
      %p47 = scmp.ne.s32.totalorder %s33, %s34
      %p48 = scmp.eq.s32.totalorder %s26, 1
      %p49 = por %p47, %p48
      %p51 = scmp.ne.s32.totalorder %s34, %s50
      %p52 = scmp.eq.s32.totalorder %s26, 0
      %p53 = por %p51, %p52
      %s55 = sadd.s32 %s54, 1
      %p58 = scmp.eq.s32.totalorder %s20, 1
      %p59 = scmp.ne.s32.totalorder %s54, %s56
      %p60 = scmp.eq.s32.totalorder %s20, 0
      %p61 = por %p59, %p60
      %p62 = scmp.ne.s32.totalorder %s54, %s56
      %p63 = scmp.eq.s32.totalorder %s25, 1
      %p64 = por %p62, %p63
      %p65 = scmp.ne.s32.totalorder %s56, %s57
      %p66 = scmp.eq.s32.totalorder %s25, 0
      %p67 = por %p65, %p66
      %p68 = scmp.ne.s32.totalorder %s56, %s57
      %p69 = scmp.eq.s32.totalorder %s26, 1
      %p70 = por %p68, %p69
      %p72 = scmp.ne.s32.totalorder %s57, %s71
      %p73 = scmp.eq.s32.totalorder %s26, 0
      %p74 = por %p72, %p73
      %s76 = sadd.s32 %s75, 1
      %p79 = scmp.eq.s32.totalorder %s20, 1
      %p80 = scmp.ne.s32.totalorder %s75, %s77
      %p81 = scmp.eq.s32.totalorder %s20, 0
      %p82 = por %p80, %p81
      %p83 = scmp.ne.s32.totalorder %s75, %s77
      %p84 = scmp.eq.s32.totalorder %s25, 1
      %p85 = por %p83, %p84
      %p86 = scmp.ne.s32.totalorder %s77, %s78
      %p87 = scmp.eq.s32.totalorder %s25, 0
      %p88 = por %p86, %p87
      %p89 = scmp.ne.s32.totalorder %s77, %s78
      %p90 = scmp.eq.s32.totalorder %s26, 1
      %p91 = por %p89, %p90
      %p93 = scmp.ne.s32.totalorder %s78, %s92
      %p94 = scmp.eq.s32.totalorder %s26, 0
      %p95 = por %p93, %p94
      %s96 = ssub.s32 %s20, %s27
      %p97 = scmp.eq.s32.totalorder %s96, 0
      %s99 = sadd.s32 %s98, 1
      %s100 = scalar_select %p97, %s98, %s99
      %p103 = pneg %p97
      %p104 = scmp.eq.s32.totalorder %s20, 1
      %p105 = por %p103, %p104
      %p106 = scmp.ne.s32.totalorder %s98, %s101
      %p107 = scmp.eq.s32.totalorder %s20, 0
      %p108 = por %p106, %p107
      %p109 = scmp.ne.s32.totalorder %s98, %s101
      %p110 = scmp.eq.s32.totalorder %s25, 1
      %p111 = por %p109, %p110
      %p112 = scmp.ne.s32.totalorder %s101, %s102
      %p113 = scmp.eq.s32.totalorder %s25, 0
      %p114 = por %p112, %p113
      %p115 = scmp.ne.s32.totalorder %s101, %s102
      %p116 = scmp.eq.s32.totalorder %s26, 1
      %p117 = por %p115, %p116
      %p119 = scmp.ne.s32.totalorder %s102, %s118
      %p120 = scmp.eq.s32.totalorder %s26, 0
      %p121 = por %p119, %p120
      %s122 = ssub.s32 %s20, %s27
      %p123 = scmp.eq.s32.totalorder %s122, 0
      %s125 = sadd.s32 %s124, 1
      %s126 = scalar_select %p123, %s124, %s125
      %p129 = pneg %p123
      %p130 = scmp.eq.s32.totalorder %s20, 1
      %p131 = por %p129, %p130
      %p132 = scmp.ne.s32.totalorder %s124, %s127
      %p133 = scmp.eq.s32.totalorder %s20, 0
      %p134 = por %p132, %p133
      %p135 = scmp.ne.s32.totalorder %s124, %s127
      %p136 = scmp.eq.s32.totalorder %s25, 1
      %p137 = por %p135, %p136
      %p138 = scmp.ne.s32.totalorder %s127, %s128
      %p139 = scmp.eq.s32.totalorder %s25, 0
      %p140 = por %p138, %p139
      %p141 = scmp.ne.s32.totalorder %s127, %s128
      %p142 = scmp.eq.s32.totalorder %s26, 1
      %p143 = por %p141, %p142
      %p145 = scmp.ne.s32.totalorder %s128, %s144
      %p146 = scmp.eq.s32.totalorder %s26, 0
      %p147 = por %p145, %p146
      %p148 = scmp.le.s32.totalorder 1, %s20
      %p149 = scmp.lt.s32.totalorder %s20, 3
      %p150 = pnand %p148, %p149
      %p151 = pneg %p150
      // Predicated region
      $region9: #{resgcn_block.3} parent=5 // pred_check
        _
      $region10: #{resgcn_block.3} parent=5 // pred_check_branch
        %153 = sbr.rel (%p150) target = $region12
      $region11: #{resgcn_block.3} parent=5 // pred_region
        %s154 = ssub.s32 %s20, 1
        // Predicated region
        $region13: #{resgcn_block.3} parent=11 // pred_check
          %p155 = pneg %p67
        $region14: #{resgcn_block.3} parent=11 // pred_check_branch
          %157 = sbr.rel (%p155) target = $region16
        $region15: #{resgcn_block.3} parent=11 // pred_region
          %s159 = ssub.s32 2048, 2048
          %160 = vsyncadd [#allocation6], %s159
          %s161 = sshll.u32 [#allocation5], 4
          %s162 = int_to_ptr.vmem [resolvable:$true] %s161
          %167 = dma.hbm_to_vmem [thread:$0]  %s1, 2048, %s162, [#allocation6], 64, 64, 4
        $region16: #{resgcn_block.3} parent=11 // pred_fallthru
          _
        // Predicated region
        $region17: #{resgcn_block.3} parent=11 // pred_check
          %p168 = pneg %p88
        $region18: #{resgcn_block.3} parent=11 // pred_check_branch
          %170 = sbr.rel (%p168) target = $region20
        $region19: #{resgcn_block.3} parent=11 // pred_region
          %s172 = ssub.s32 16, 16
          %173 = vsyncadd [#allocation6], %s172
          %s175 = sshll.u32 [#allocation7], 4
          %s176 = int_to_ptr.vmem [resolvable:$true] %s175
          %178 = dma.hbm_to_vmem [thread:$0]  %s2, 16, %s176, [#allocation6]
        $region20: #{resgcn_block.3} parent=11 // pred_fallthru
          _
      $region12: #{resgcn_block.3} parent=5 // pred_fallthru
        _
      %p179 = scmp.lt.s32.totalorder %s20, 2
      // Predicated region
      $region21: #{resgcn_block.3} parent=5 // pred_check
        %p180 = pneg %p179
      $region22: #{resgcn_block.3} parent=5 // pred_check_branch
        %182 = sbr.rel (%p180) target = $region24
      $region23: #{resgcn_block.3} parent=5 // pred_region
        // Predicated region
        $region25: #{resgcn_block.3} parent=23 // pred_check
          %p183 = pneg %p40
        $region26: #{resgcn_block.3} parent=23 // pred_check_branch
          %185 = sbr.rel (%p183) target = $region28
        $region27: #{resgcn_block.3} parent=23 // pred_region
          %s186 = sand.u32 %s30, 1
          %s187 = scalar_lea.sflag [#allocation3], %s186
          %s188 = sand.u32 %s30, 1
          %s189 = smul.addr %s188, 128
          %s190 = scalar_lea.vmem [#allocation2], %s189
          %s191 = smul.u32 16, %s20
          %s193 = ssub.s32 2048, 2048
          %194 = vsyncadd %s187, %s193
          %s195 = smul.addr %s191, 2
          %s196 = smul.addr %s195, 64
          %s197 = scalar_lea.hbm %s0, %s196
          %s198 = sshll.u32 %s190, 4
          %s199 = int_to_ptr.vmem [resolvable:$true] %s198
          %204 = dma.hbm_to_vmem [thread:$0]  %s197, 2048, %s199, %s187, 128, 128, 8
        $region28: #{resgcn_block.3} parent=23 // pred_fallthru
          _
        // Predicated region
        $region29: #{resgcn_block.3} parent=23 // pred_check
          %p205 = pneg %p108
        $region30: #{resgcn_block.3} parent=23 // pred_check_branch
          %207 = sbr.rel (%p205) target = $region32
        $region31: #{resgcn_block.3} parent=23 // pred_region
          %s208 = sand.u32 %s98, 1
          %s209 = scalar_lea.sflag [#allocation9], %s208
          %s210 = sand.u32 %s98, 1
          %s211 = smul.addr %s210, 128
          %s212 = scalar_lea.vmem [#allocation8], %s211
          %s213 = smul.u32 16, %s20
          %s215 = ssub.s32 2048, 2048
          %216 = vsyncadd %s209, %s215
          %s217 = smul.addr %s213, 128
          %s218 = scalar_lea.hbm %s3, %s217
          %s219 = sshll.u32 %s212, 4
          %s220 = int_to_ptr.vmem [resolvable:$true] %s219
          %225 = dma.hbm_to_vmem [thread:$0]  %s218, 2048, %s220, %s209, 128, 128, 8
        $region32: #{resgcn_block.3} parent=23 // pred_fallthru
          _
      $region24: #{resgcn_block.3} parent=5 // pred_fallthru
        _
      %p226 = scmp.le.s32.totalorder 1, %s20
      %p227 = scmp.lt.s32.totalorder %s20, 3
      %p228 = pnand %p226, %p227
      %p229 = pneg %p228
      // Predicated region
      $region33: #{resgcn_block.3} parent=5 // pred_check
        _
      $region34: #{resgcn_block.3} parent=5 // pred_check_branch
        %231 = sbr.rel (%p228) target = $region36
      $region35: #{resgcn_block.3} parent=5 // pred_region
        %s232 = ssub.s32 %s20, 1
        %s233 = sand.u32 %s33, 1
        %s234 = scalar_lea.sflag [#allocation3], %s233
        %s235 = sand.u32 %s33, 1
        %s236 = smul.addr %s235, 128
        %s237 = scalar_lea.vmem [#allocation2], %s236
        // Predicated region
        $region37: #{resgcn_block.3} parent=35 // pred_check
          %p238 = pneg %p46
        $region38: #{resgcn_block.3} parent=35 // pred_check_branch
          %240 = sbr.rel (%p238) target = $region40
        $region39: #{resgcn_block.3} parent=35 // pred_region
          %241 = dma.done %s234, 2048
        $region40: #{resgcn_block.3} parent=35 // pred_fallthru
          _
        // Predicated region
        $region41: #{resgcn_block.3} parent=35 // pred_check
          %p242 = pneg %p67
        $region42: #{resgcn_block.3} parent=35 // pred_check_branch
          %244 = sbr.rel (%p242) target = $region44
        $region43: #{resgcn_block.3} parent=35 // pred_region
          %245 = dma.done [#allocation6], 2048
        $region44: #{resgcn_block.3} parent=35 // pred_fallthru
          _
        // Predicated region
        $region45: #{resgcn_block.3} parent=35 // pred_check
          %p246 = pneg %p88
        $region46: #{resgcn_block.3} parent=35 // pred_check_branch
          %248 = sbr.rel (%p246) target = $region48
        $region47: #{resgcn_block.3} parent=35 // pred_region
          %249 = dma.done [#allocation6], 16
        $region48: #{resgcn_block.3} parent=35 // pred_fallthru
          _
        %s250 = sand.u32 %s101, 1
        %s251 = scalar_lea.sflag [#allocation9], %s250
        %s252 = sand.u32 %s101, 1
        %s253 = smul.addr %s252, 128
        %s254 = scalar_lea.vmem [#allocation8], %s253
        // Predicated region
        $region49: #{resgcn_block.3} parent=35 // pred_check
          %p255 = pneg %p114
        $region50: #{resgcn_block.3} parent=35 // pred_check_branch
          %257 = sbr.rel (%p255) target = $region52
        $region51: #{resgcn_block.3} parent=35 // pred_region
          %258 = dma.done %s251, 2048
        $region52: #{resgcn_block.3} parent=35 // pred_fallthru
          _
        %s259 = sand.u32 %s33, 1
        %s260 = scalar_lea.sflag [#allocation3], %s259
        %s261 = sand.u32 %s33, 1
        %s262 = smul.addr %s261, 128
        %s263 = scalar_lea.vmem [#allocation2], %s262
        %p264 = pneg %p46
        %p265 = pneg %p43
        %p266 = pneg %p67
        %p267 = pneg %p64
        %p268 = pneg %p88
        %p269 = pneg %p85
        %s270 = sand.u32 %s101, 1
        %s271 = scalar_lea.sflag [#allocation9], %s270
        %s272 = sand.u32 %s101, 1
        %s273 = smul.addr %s272, 128
        %s274 = scalar_lea.vmem [#allocation8], %s273
        %p275 = pneg %p114
        %p276 = pneg %p111
        %p277 = pneg %p140
        %p278 = pneg %p137
        %s279 = sand.u32 %s127, 1
        %s280 = scalar_lea.sflag [#allocation4], %s279
        %s281 = sand.u32 %s127, 1
        %s282 = smul.addr %s281, 128
        %s283 = scalar_lea.vmem [#allocation10], %s282
        %s284 = smul.u32 16, %s25
        %s285 = smul.u32 16, %s25
        %s286 = smul.u32 16, %s25
        %v288 = vld [vmem:[%s237] sm:$0xff]
        %v289 = vld [vmem:[%s237 + $0x8] sm:$0xff]
        %v290 = vld [vmem:[%s237 + $0x10] sm:$0xff]
        %v291 = vld [vmem:[%s237 + $0x18] sm:$0xff]
        %v292 = vld [vmem:[%s237 + $0x20] sm:$0xff]
        %v293 = vld [vmem:[%s237 + $0x28] sm:$0xff]
        %v294 = vld [vmem:[%s237 + $0x30] sm:$0xff]
        %v295 = vld [vmem:[%s237 + $0x38] sm:$0xff]
        %v296 = vld [vmem:[%s237 + $0x40] sm:$0xff]
        %v297 = vld [vmem:[%s237 + $0x48] sm:$0xff]
        %v298 = vld [vmem:[%s237 + $0x50] sm:$0xff]
        %v299 = vld [vmem:[%s237 + $0x58] sm:$0xff]
        %v300 = vld [vmem:[%s237 + $0x60] sm:$0xff]
        %v301 = vld [vmem:[%s237 + $0x68] sm:$0xff]
        %v302 = vld [vmem:[%s237 + $0x70] sm:$0xff]
        %v303 = vld [vmem:[%s237 + $0x78] sm:$0xff]
        %v304 = vld [vmem:[#allocation5] sm:$0xf]
        %v305 = vld [vmem:[#allocation5 + $0x4] sm:$0xf]
        %v306 = vld [vmem:[#allocation5 + $0x8] sm:$0xf]
        %v307 = vld [vmem:[#allocation5 + $0xc] sm:$0xf]
        %v308 = vld [vmem:[#allocation5 + $0x10] sm:$0xf]
        %v309 = vld [vmem:[#allocation5 + $0x14] sm:$0xf]
        %v310 = vld [vmem:[#allocation5 + $0x18] sm:$0xf]
        %v311 = vld [vmem:[#allocation5 + $0x1c] sm:$0xf]
        %v312 = vld [vmem:[#allocation5 + $0x20] sm:$0xf]
        %v313 = vld [vmem:[#allocation5 + $0x24] sm:$0xf]
        %v314 = vld [vmem:[#allocation5 + $0x28] sm:$0xf]
        %v315 = vld [vmem:[#allocation5 + $0x2c] sm:$0xf]
        %v316 = vld [vmem:[#allocation5 + $0x30] sm:$0xf]
        %v317 = vld [vmem:[#allocation5 + $0x34] sm:$0xf]
        %v318 = vld [vmem:[#allocation5 + $0x38] sm:$0xf]
        %v319 = vld [vmem:[#allocation5 + $0x3c] sm:$0xf]
        %v320 = vld [vmem:[#allocation5 + $0x40] sm:$0xf]
        %v321 = vld [vmem:[#allocation5 + $0x44] sm:$0xf]
        %v322 = vld [vmem:[#allocation5 + $0x48] sm:$0xf]
        %v323 = vld [vmem:[#allocation5 + $0x4c] sm:$0xf]
        %v324 = vld [vmem:[#allocation5 + $0x50] sm:$0xf]
        %v325 = vld [vmem:[#allocation5 + $0x54] sm:$0xf]
        %v326 = vld [vmem:[#allocation5 + $0x58] sm:$0xf]
        %v327 = vld [vmem:[#allocation5 + $0x5c] sm:$0xf]
        %v328 = vld [vmem:[#allocation5 + $0x60] sm:$0xf]
        %v329 = vld [vmem:[#allocation5 + $0x64] sm:$0xf]
        %v330 = vld [vmem:[#allocation5 + $0x68] sm:$0xf]
        %v331 = vld [vmem:[#allocation5 + $0x6c] sm:$0xf]
        %v332 = vld [vmem:[#allocation5 + $0x70] sm:$0xf]
        %v333 = vld [vmem:[#allocation5 + $0x74] sm:$0xf]
        %v334 = vld [vmem:[#allocation5 + $0x78] sm:$0xf]
        %v335 = vld [vmem:[#allocation5 + $0x7c] sm:$0xf]
        %v336 = vld [vmem:[#allocation7] sm:$0x1]
        %v338 = vlaneseq
        %v339 = vshrl.u32 %v338, 7
        %v340 = vsub.s32 0, %v339
        %v341 = vrot.slane %v336, %v340
        %v359 = vunpack.c.l.b16 %v288
        %v360 = vunpack.c.h.b16 %v288
        %v361 = vunpack.c.l.b16 %v289
        %v362 = vunpack.c.h.b16 %v289
        %v363 = vunpack.c.l.b16 %v290
        %v364 = vunpack.c.h.b16 %v290
        %v365 = vunpack.c.l.b16 %v291
        %v366 = vunpack.c.h.b16 %v291
        %v367 = vunpack.c.l.b16 %v292
        %v368 = vunpack.c.h.b16 %v292
        %v369 = vunpack.c.l.b16 %v293
        %v370 = vunpack.c.h.b16 %v293
        %v371 = vunpack.c.l.b16 %v294
        %v372 = vunpack.c.h.b16 %v294
        %v373 = vunpack.c.l.b16 %v295
        %v374 = vunpack.c.h.b16 %v295
        %v375 = vunpack.c.l.b16 %v296
        %v376 = vunpack.c.h.b16 %v296
        %v377 = vunpack.c.l.b16 %v297
        %v378 = vunpack.c.h.b16 %v297
        %v379 = vunpack.c.l.b16 %v298
        %v380 = vunpack.c.h.b16 %v298
        %v381 = vunpack.c.l.b16 %v299
        %v382 = vunpack.c.h.b16 %v299
        %v383 = vunpack.c.l.b16 %v300
        %v384 = vunpack.c.h.b16 %v300
        %v385 = vunpack.c.l.b16 %v301
        %v386 = vunpack.c.h.b16 %v301
        %v387 = vunpack.c.l.b16 %v302
        %v388 = vunpack.c.h.b16 %v302
        %v389 = vunpack.c.l.b16 %v303
        %v390 = vunpack.c.h.b16 %v303
        %v391 = vpack.c.b16 %v361, %v359
        %v392 = vpack.c.b16 %v362, %v360
        %v393 = vpack.c.b16 %v365, %v363
        %v394 = vpack.c.b16 %v366, %v364
        %v395 = vpack.c.b16 %v369, %v367
        %v396 = vpack.c.b16 %v370, %v368
        %v397 = vpack.c.b16 %v373, %v371
        %v398 = vpack.c.b16 %v374, %v372
        %v399 = vpack.c.b16 %v377, %v375
        %v400 = vpack.c.b16 %v378, %v376
        %v401 = vpack.c.b16 %v381, %v379
        %v402 = vpack.c.b16 %v382, %v380
        %v403 = vpack.c.b16 %v385, %v383
        %v404 = vpack.c.b16 %v386, %v384
        %v405 = vpack.c.b16 %v389, %v387
        %v406 = vpack.c.b16 %v390, %v388
        %v455 = vunpack.c.l.b16 %v304
        %v456 = vunpack.c.l.b16 %v305
        %v457 = vunpack.c.l.b16 %v306
        %v458 = vunpack.c.l.b16 %v307
        %v459 = vunpack.c.l.b16 %v308
        %v460 = vunpack.c.l.b16 %v309
        %v461 = vunpack.c.l.b16 %v310
        %v462 = vunpack.c.l.b16 %v311
        %v463 = vunpack.c.l.b16 %v312
        %v464 = vunpack.c.l.b16 %v313
        %v465 = vunpack.c.l.b16 %v314
        %v466 = vunpack.c.l.b16 %v315
        %v467 = vunpack.c.l.b16 %v316
        %v468 = vunpack.c.l.b16 %v317
        %v469 = vunpack.c.l.b16 %v318
        %v470 = vunpack.c.l.b16 %v319
        %v471 = vunpack.c.l.b16 %v320
        %v472 = vunpack.c.l.b16 %v321
        %v473 = vunpack.c.l.b16 %v322
        %v474 = vunpack.c.l.b16 %v323
        %v475 = vunpack.c.l.b16 %v324
        %v476 = vunpack.c.l.b16 %v325
        %v477 = vunpack.c.l.b16 %v326
        %v478 = vunpack.c.l.b16 %v327
        %v479 = vunpack.c.l.b16 %v328
        %v480 = vunpack.c.l.b16 %v329
        %v481 = vunpack.c.l.b16 %v330
        %v482 = vunpack.c.l.b16 %v331
        %v483 = vunpack.c.l.b16 %v332
        %v484 = vunpack.c.l.b16 %v333
        %v485 = vunpack.c.l.b16 %v334
        %v486 = vunpack.c.l.b16 %v335
        %v487 = vpack.c.b16 %v456, %v455
        %v488 = vpack.c.b16 %v458, %v457
        %v489 = vpack.c.b16 %v460, %v459
        %v490 = vpack.c.b16 %v462, %v461
        %v491 = vpack.c.b16 %v464, %v463
        %v492 = vpack.c.b16 %v466, %v465
        %v493 = vpack.c.b16 %v468, %v467
        %v494 = vpack.c.b16 %v470, %v469
        %v495 = vpack.c.b16 %v472, %v471
        %v496 = vpack.c.b16 %v474, %v473
        %v497 = vpack.c.b16 %v476, %v475
        %v498 = vpack.c.b16 %v478, %v477
        %v499 = vpack.c.b16 %v480, %v479
        %v500 = vpack.c.b16 %v482, %v481
        %v501 = vpack.c.b16 %v484, %v483
        %v502 = vpack.c.b16 %v486, %v485
        %519 = vmatprep.subr.bf16.mxu0 0
        %520 = vmatpush1.bf16.msra.mxu0 %v487
        %521 = vmatprep.subr.bf16.mxu0 0
        %522 = vmatpush1.bf16.msra.mxu0 %v488
        %523 = vmatprep.subr.bf16.mxu0 0
        %524 = vmatpush1.bf16.msra.mxu0 %v489
        %525 = vmatprep.subr.bf16.mxu0 0
        %526 = vmatpush1.bf16.msra.mxu0 %v490
        %527 = vmatprep.subr.bf16.mxu0 0
        %528 = vmatpush1.bf16.msra.mxu0 %v491
        %529 = vmatprep.subr.bf16.mxu0 0
        %530 = vmatpush1.bf16.msra.mxu0 %v492
        %531 = vmatprep.subr.bf16.mxu0 0
        %532 = vmatpush1.bf16.msra.mxu0 %v493
        %533 = vmatprep.subr.bf16.mxu0 0
        %534 = vmatpush1.bf16.msra.mxu0 %v494
        %535 = vmatprep.subr.bf16.mxu0 0
        %536 = vmatpush1.bf16.msra.mxu0 %v495
        %537 = vmatprep.subr.bf16.mxu0 0
        %538 = vmatpush1.bf16.msra.mxu0 %v496
        %539 = vmatprep.subr.bf16.mxu0 0
        %540 = vmatpush1.bf16.msra.mxu0 %v497
        %541 = vmatprep.subr.bf16.mxu0 0
        %542 = vmatpush1.bf16.msra.mxu0 %v498
        %543 = vmatprep.subr.bf16.mxu0 0
        %544 = vmatpush1.bf16.msra.mxu0 %v499
        %545 = vmatprep.subr.bf16.mxu0 0
        %546 = vmatpush1.bf16.msra.mxu0 %v500
        %547 = vmatprep.subr.bf16.mxu0 0
        %548 = vmatpush1.bf16.msra.mxu0 %v501
        %549 = vmatprep.subr.bf16.mxu0 0
        %550 = vmatpush1.bf16.msra.mxu0 %v502
        %551 = vmatprep.mubr.bf16.mxu0 %v392
        %552 = vmatmul.mubr.bf16.gmra.mrb[0].mxu0 %v391
        %v553 = vpop.f32.mrb[0].mxu0
        %v554 = vadd.f32 %v341, %v553
        %v555 = vpop.f32.mrb[0].mxu0
        %v556 = vpop.f32.mrb[0].mxu0
        %v557 = vadd.f32 %v341, %v556
        %v558 = vpop.f32.mrb[0].mxu0
        %559 = vmatprep.mubr.bf16.mxu0 %v394
        %560 = vmatmul.mubr.bf16.gmra.mrb[0].mxu0 %v393
        %v561 = vpop.f32.mrb[0].mxu0
        %v562 = vadd.f32 %v341, %v561
        %v563 = vpop.f32.mrb[0].mxu0
        %v564 = vpop.f32.mrb[0].mxu0
        %v565 = vadd.f32 %v341, %v564
        %v566 = vpop.f32.mrb[0].mxu0
        %567 = vmatprep.mubr.bf16.mxu0 %v396
        %568 = vmatmul.mubr.bf16.gmra.mrb[0].mxu0 %v395
        %v569 = vpop.f32.mrb[0].mxu0
        %v570 = vadd.f32 %v341, %v569
        %v571 = vpop.f32.mrb[0].mxu0
        %v572 = vpop.f32.mrb[0].mxu0
        %v573 = vadd.f32 %v341, %v572
        %v574 = vpop.f32.mrb[0].mxu0
        %575 = vmatprep.mubr.bf16.mxu0 %v398
        %576 = vmatmul.mubr.bf16.gmra.mrb[0].mxu0 %v397
        %v577 = vpop.f32.mrb[0].mxu0
        %v578 = vadd.f32 %v341, %v577
        %v579 = vpop.f32.mrb[0].mxu0
        %v580 = vpop.f32.mrb[0].mxu0
        %v581 = vadd.f32 %v341, %v580
        %v582 = vpop.f32.mrb[0].mxu0
        %583 = vmatprep.mubr.bf16.mxu0 %v400
        %584 = vmatmul.mubr.bf16.gmra.mrb[0].mxu0 %v399
        %v585 = vpop.f32.mrb[0].mxu0
        %v586 = vadd.f32 %v341, %v585
        %v587 = vpop.f32.mrb[0].mxu0
        %v588 = vpop.f32.mrb[0].mxu0
        %v589 = vadd.f32 %v341, %v588
        %v590 = vpop.f32.mrb[0].mxu0
        %591 = vmatprep.mubr.bf16.mxu0 %v402
        %592 = vmatmul.mubr.bf16.gmra.mrb[0].mxu0 %v401
        %v593 = vpop.f32.mrb[0].mxu0
        %v594 = vadd.f32 %v341, %v593
        %v595 = vpop.f32.mrb[0].mxu0
        %v596 = vpop.f32.mrb[0].mxu0
        %v597 = vadd.f32 %v341, %v596
        %v598 = vpop.f32.mrb[0].mxu0
        %599 = vmatprep.mubr.bf16.mxu0 %v404
        %600 = vmatmul.mubr.bf16.gmra.mrb[0].mxu0 %v403
        %v601 = vpop.f32.mrb[0].mxu0
        %v602 = vadd.f32 %v341, %v601
        %v603 = vpop.f32.mrb[0].mxu0
        %v604 = vpop.f32.mrb[0].mxu0
        %v605 = vadd.f32 %v341, %v604
        %v606 = vpop.f32.mrb[0].mxu0
        %607 = vmatprep.mubr.bf16.mxu0 %v406
        %608 = vmatmul.mubr.bf16.gmra.mrb[0].mxu0 %v405
        %v609 = vpop.f32.mrb[0].mxu0
        %v610 = vadd.f32 %v341, %v609
        %v611 = vpop.f32.mrb[0].mxu0
        %v612 = vpop.f32.mrb[0].mxu0
        %v613 = vadd.f32 %v341, %v612
        %v614 = vpop.f32.mrb[0].mxu0
        %615 = vdwg.mxu0
        %v616 = vmax.f32 %v554, 0.0
        %v617 = vmax.f32 %v557, 0.0
        %v618 = vmax.f32 %v562, 0.0
        %v619 = vmax.f32 %v565, 0.0
        %v620 = vmax.f32 %v570, 0.0
        %v621 = vmax.f32 %v573, 0.0
        %v622 = vmax.f32 %v578, 0.0
        %v623 = vmax.f32 %v581, 0.0
        %v624 = vmax.f32 %v586, 0.0
        %v625 = vmax.f32 %v589, 0.0
        %v626 = vmax.f32 %v594, 0.0
        %v627 = vmax.f32 %v597, 0.0
        %v628 = vmax.f32 %v602, 0.0
        %v629 = vmax.f32 %v605, 0.0
        %v630 = vmax.f32 %v610, 0.0
        %v631 = vmax.f32 %v613, 0.0
        %v632 = vmul.f32 %v616, %v616
        %v633 = vmul.f32 %v617, %v617
        %v634 = vmul.f32 %v618, %v618
        %v635 = vmul.f32 %v619, %v619
        %v636 = vmul.f32 %v620, %v620
        %v637 = vmul.f32 %v621, %v621
        %v638 = vmul.f32 %v622, %v622
        %v639 = vmul.f32 %v623, %v623
        %v640 = vmul.f32 %v624, %v624
        %v641 = vmul.f32 %v625, %v625
        %v642 = vmul.f32 %v626, %v626
        %v643 = vmul.f32 %v627, %v627
        %v644 = vmul.f32 %v628, %v628
        %v645 = vmul.f32 %v629, %v629
        %v646 = vmul.f32 %v630, %v630
        %v647 = vmul.f32 %v631, %v631
        %648 = vadd.xlane.f32.xlu0 %v632
        %v649 = vpop.xlane.xlu0 %648
        %650 = vadd.xlane.f32.xlu0 %v633
        %v651 = vpop.xlane.xlu0 %650
        %652 = vadd.xlane.f32.xlu0 %v634
        %v653 = vpop.xlane.xlu0 %652
        %654 = vadd.xlane.f32.xlu0 %v635
        %v655 = vpop.xlane.xlu0 %654
        %656 = vadd.xlane.f32.xlu0 %v636
        %v657 = vpop.xlane.xlu0 %656
        %658 = vadd.xlane.f32.xlu0 %v637
        %v659 = vpop.xlane.xlu0 %658
        %660 = vadd.xlane.f32.xlu0 %v638
        %v661 = vpop.xlane.xlu0 %660
        %662 = vadd.xlane.f32.xlu0 %v639
        %v663 = vpop.xlane.xlu0 %662
        %664 = vadd.xlane.f32.xlu0 %v640
        %v665 = vpop.xlane.xlu0 %664
        %666 = vadd.xlane.f32.xlu0 %v641
        %v667 = vpop.xlane.xlu0 %666
        %668 = vadd.xlane.f32.xlu0 %v642
        %v669 = vpop.xlane.xlu0 %668
        %670 = vadd.xlane.f32.xlu0 %v643
        %v671 = vpop.xlane.xlu0 %670
        %672 = vadd.xlane.f32.xlu0 %v644
        %v673 = vpop.xlane.xlu0 %672
        %674 = vadd.xlane.f32.xlu0 %v645
        %v675 = vpop.xlane.xlu0 %674
        %676 = vadd.xlane.f32.xlu0 %v646
        %v677 = vpop.xlane.xlu0 %676
        %678 = vadd.xlane.f32.xlu0 %v647
        %v679 = vpop.xlane.xlu0 %678
        %v680 = vmax.f32 %v649, 1e-24
        %v681 = vmax.f32 %v651, 1e-24
        %v682 = vmax.f32 %v653, 1e-24
        %v683 = vmax.f32 %v655, 1e-24
        %v684 = vmax.f32 %v657, 1e-24
        %v685 = vmax.f32 %v659, 1e-24
        %v686 = vmax.f32 %v661, 1e-24
        %v687 = vmax.f32 %v663, 1e-24
        %v688 = vmax.f32 %v665, 1e-24
        %v689 = vmax.f32 %v667, 1e-24
        %v690 = vmax.f32 %v669, 1e-24
        %v691 = vmax.f32 %v671, 1e-24
        %v692 = vmax.f32 %v673, 1e-24
        %v693 = vmax.f32 %v675, 1e-24
        %v694 = vmax.f32 %v677, 1e-24
        %v695 = vmax.f32 %v679, 1e-24
        %v696 = vrsqrt.pop %v680
        %v697 = vrsqrt.pop %v681
        %v698 = vrsqrt.pop %v682
        %v699 = vrsqrt.pop %v683
        %v700 = vrsqrt.pop %v684
        %v701 = vrsqrt.pop %v685
        %v702 = vrsqrt.pop %v686
        %v703 = vrsqrt.pop %v687
        %v704 = vrsqrt.pop %v688
        %v705 = vrsqrt.pop %v689
        %v706 = vrsqrt.pop %v690
        %v707 = vrsqrt.pop %v691
        %v708 = vrsqrt.pop %v692
        %v709 = vrsqrt.pop %v693
        %v710 = vrsqrt.pop %v694
        %v711 = vrsqrt.pop %v695
        %v712 = vmul.f32 %v616, %v696
        %v713 = vmul.f32 %v617, %v697
        %v714 = vmul.f32 %v618, %v698
        %v715 = vmul.f32 %v619, %v699
        %v716 = vmul.f32 %v620, %v700
        %v717 = vmul.f32 %v621, %v701
        %v718 = vmul.f32 %v622, %v702
        %v719 = vmul.f32 %v623, %v703
        %v720 = vmul.f32 %v624, %v704
        %v721 = vmul.f32 %v625, %v705
        %v722 = vmul.f32 %v626, %v706
        %v723 = vmul.f32 %v627, %v707
        %v724 = vmul.f32 %v628, %v708
        %v725 = vmul.f32 %v629, %v709
        %v726 = vmul.f32 %v630, %v710
        %v727 = vmul.f32 %v631, %v711
        %v728 = vld [vmem:[%s254] sm:$0xff]
        %v729 = vld [vmem:[%s254 + $0x8] sm:$0xff]
        %v730 = vld [vmem:[%s254 + $0x10] sm:$0xff]
        %v731 = vld [vmem:[%s254 + $0x18] sm:$0xff]
        %v732 = vld [vmem:[%s254 + $0x20] sm:$0xff]
        %v733 = vld [vmem:[%s254 + $0x28] sm:$0xff]
        %v734 = vld [vmem:[%s254 + $0x30] sm:$0xff]
        %v735 = vld [vmem:[%s254 + $0x38] sm:$0xff]
        %v736 = vld [vmem:[%s254 + $0x40] sm:$0xff]
        %v737 = vld [vmem:[%s254 + $0x48] sm:$0xff]
        %v738 = vld [vmem:[%s254 + $0x50] sm:$0xff]
        %v739 = vld [vmem:[%s254 + $0x58] sm:$0xff]
        %v740 = vld [vmem:[%s254 + $0x60] sm:$0xff]
        %v741 = vld [vmem:[%s254 + $0x68] sm:$0xff]
        %v742 = vld [vmem:[%s254 + $0x70] sm:$0xff]
        %v743 = vld [vmem:[%s254 + $0x78] sm:$0xff]
        %v744 = vadd.f32 %v712, %v728
        %v745 = vadd.f32 %v713, %v729
        %v746 = vadd.f32 %v714, %v730
        %v747 = vadd.f32 %v715, %v731
        %v748 = vadd.f32 %v716, %v732
        %v749 = vadd.f32 %v717, %v733
        %v750 = vadd.f32 %v718, %v734
        %v751 = vadd.f32 %v719, %v735
        %v752 = vadd.f32 %v720, %v736
        %v753 = vadd.f32 %v721, %v737
        %v754 = vadd.f32 %v722, %v738
        %v755 = vadd.f32 %v723, %v739
        %v756 = vadd.f32 %v724, %v740
        %v757 = vadd.f32 %v725, %v741
        %v758 = vadd.f32 %v726, %v742
        %v759 = vadd.f32 %v727, %v743
        %v760 = vmul.f32 %v744, 0.5
        %v761 = vmul.f32 %v745, 0.5
        %v762 = vmul.f32 %v746, 0.5
        %v763 = vmul.f32 %v747, 0.5
        %v764 = vmul.f32 %v748, 0.5
        %v765 = vmul.f32 %v749, 0.5
        %v766 = vmul.f32 %v750, 0.5
        %v767 = vmul.f32 %v751, 0.5
        %v768 = vmul.f32 %v752, 0.5
        %v769 = vmul.f32 %v753, 0.5
        %v770 = vmul.f32 %v754, 0.5
        %v771 = vmul.f32 %v755, 0.5
        %v772 = vmul.f32 %v756, 0.5
        %v773 = vmul.f32 %v757, 0.5
        %v774 = vmul.f32 %v758, 0.5
        %v775 = vmul.f32 %v759, 0.5
        %776 = vst [vmem:[%s283] sm:$0xff] %v760
        %777 = vst [vmem:[%s283 + $0x8] sm:$0xff] %v761
        %778 = vst [vmem:[%s283 + $0x10] sm:$0xff] %v762
        %779 = vst [vmem:[%s283 + $0x18] sm:$0xff] %v763
        %780 = vst [vmem:[%s283 + $0x20] sm:$0xff] %v764
        %781 = vst [vmem:[%s283 + $0x28] sm:$0xff] %v765
        %782 = vst [vmem:[%s283 + $0x30] sm:$0xff] %v766
        %783 = vst [vmem:[%s283 + $0x38] sm:$0xff] %v767
        %784 = vst [vmem:[%s283 + $0x40] sm:$0xff] %v768
        %785 = vst [vmem:[%s283 + $0x48] sm:$0xff] %v769
        %786 = vst [vmem:[%s283 + $0x50] sm:$0xff] %v770
        %787 = vst [vmem:[%s283 + $0x58] sm:$0xff] %v771
        %788 = vst [vmem:[%s283 + $0x60] sm:$0xff] %v772
        %789 = vst [vmem:[%s283 + $0x68] sm:$0xff] %v773
        %790 = vst [vmem:[%s283 + $0x70] sm:$0xff] %v774
        %791 = vst [vmem:[%s283 + $0x78] sm:$0xff] %v775
        %s792 = sand.u32 %s127, 1
        %s793 = scalar_lea.sflag [#allocation4], %s792
        %s794 = sand.u32 %s127, 1
        %s795 = smul.addr %s794, 128
        %s796 = scalar_lea.vmem [#allocation10], %s795
        // Predicated region
        $region53: #{resgcn_block.3} parent=35 // pred_check
          %p797 = pneg %p137
        $region54: #{resgcn_block.3} parent=35 // pred_check_branch
          %799 = sbr.rel (%p797) target = $region56
        $region55: #{resgcn_block.3} parent=35 // pred_region
          %s800 = smul.u32 16, %s25
          %s802 = ssub.s32 2048, 2048
          %803 = vsyncadd %s793, %s802
          %s804 = smul.addr %s800, 128
          %s805 = scalar_lea.hbm %s4, %s804
          %s806 = sshll.u32 %s796, 4
          %s807 = int_to_ptr.vmem [resolvable:$true] %s806
          %812 = dma.vmem_to_hbm [thread:$0]  %s807, 2048, %s805, %s793, 128, 128, 8
        $region56: #{resgcn_block.3} parent=35 // pred_fallthru
          _
      $region36: #{resgcn_block.3} parent=5 // pred_fallthru
        _
      %p813 = scmp.le.s32.totalorder 2, %s20
      // Predicated region
      $region57: #{resgcn_block.3} parent=5 // pred_check
        %p814 = pneg %p813
      $region58: #{resgcn_block.3} parent=5 // pred_check_branch
        %816 = sbr.rel (%p814) target = $region60
      $region59: #{resgcn_block.3} parent=5 // pred_region
        %s817 = ssub.s32 %s20, 2
        // Predicated region
        $region61: #{resgcn_block.3} parent=59 // pred_check
          %p818 = pneg %p143
        $region62: #{resgcn_block.3} parent=59 // pred_check_branch
          %820 = sbr.rel (%p818) target = $region64
        $region63: #{resgcn_block.3} parent=59 // pred_region
          %s821 = sand.u32 %s128, 1
          %s822 = scalar_lea.sflag [#allocation4], %s821
          %s823 = sand.u32 %s128, 1
          %s824 = smul.addr %s823, 128
          %s825 = scalar_lea.vmem [#allocation10], %s824
          %826 = dma.done %s822, 2048
        $region64: #{resgcn_block.3} parent=59 // pred_fallthru
          _
      $region60: #{resgcn_block.3} parent=5 // pred_fallthru
        _
    $region6: #{resgcn_block.3} parent=1 // loop_footer
      %s24 = sadd.s32 1, %s20
    $region7: #{resgcn_block.3} parent=1 // loop_footer_branch
      %19 = sbr.rel target = $region3
    $region8: #{resgcn_block.3} parent=1 // loop_exit
      _
    %827 = vsyncpa [#allocation3], 1
    %s828 = scalar_lea.sflag [#allocation3], 1
    %829 = vsyncpa %s828, 1
    %830 = vsyncpa [#allocation6], 1
    %831 = vsyncpa [#allocation9], 1
    %s832 = scalar_lea.sflag [#allocation9], 1
    %833 = vsyncpa %s832, 1
    %834 = vsyncpa [#allocation4], 1
    %s835 = scalar_lea.sflag [#allocation4], 1
    %836 = vsyncpa %s835, 1

// kernel: resgcn_block.2
$region0: #{resgcn_block.2}
  #allocation0 [shape = 'u32[]', space=smem, size = 0x4, offset = 0x4, fixed_abs, tag = 'smem constant byte address 0x4 - core index']
  #allocation1 [shape = 'u32[144,128]{1,0:T(1,128)}', space=vmem, size = 0x12000, scoped, tag = 'internal scratch']
  %s0 = inlined_call_operand.vmem [shape: f32[256,128], index: 0, kind: input, shape index: {}]
  %s1 = inlined_call_operand.vmem [shape: f32[128,128], index: 1, kind: input, shape index: {}]
  %s2 = inlined_call_operand.hbm [shape: bf16[256,128], index: 2, kind: output, shape index: {}]
  %s3 = sld [smem:[#allocation0]]
  $region41: #{resgcn_block.2} parent=0
    _
  %s5 = ssub.s32 1, %s3
  %s6 = scalar_select 0, %s5, %s3
  $region1: #{resgcn_block.2} parent=0
    #allocation2 [shape = 'u8[65536]{0}', space=vmem, size = 0x10000, scoped, tag = 'output window, operand 0']
    #allocation3 [shape = 's32[2]{0}', space=sflag, size = 0x8, scoped, tag = 'scoped memory for resgcn_block.2']
    %7 = vsyncpa [#allocation3], 0
    %s8 = scalar_lea.sflag [#allocation3], 1
    %9 = vsyncpa %s8, 0
    loop: start=0, step=1, limit=4
    $region2: #{resgcn_block.2} parent=1 // loop_pre_header
      _
    $region3: #{resgcn_block.2} parent=1 // loop_header
      %s11 = sphi 0, %s15
      %p12 = scmp.ge.s32.totalorder %s11, 4
      %s21 = sphi 0, %s23
      %s24 = sphi 0, %s21
      %s25 = sphi 0, %s24
      %s41 = sphi 0, %s25
      %s45 = sphi 0, %s45
      %s47 = sphi 0, %s45
      %s48 = sphi 0, %s47
      %s62 = sphi 0, %s48
      %s68 = sphi 0, %s70
      %s71 = sphi 0, %s68
      %s72 = sphi 0, %s71
      %s88 = sphi 0, %s72
    $region4: #{resgcn_block.2} parent=1 // loop_header_branch
      %14 = sbr.rel (%p12) target = $region8
    $region5: #{resgcn_block.2} parent=1 // loop_body
      %s16 = ssub.s32 %s11, 1
      %s17 = ssub.s32 %s11, 2
      %s18 = sadd.s32 %s11, 1
      %s19 = ssub.s32 %s11, %s18
      %p20 = scmp.eq.s32.totalorder %s19, 0
      %s22 = sadd.s32 %s21, 1
      %s23 = scalar_select %p20, %s21, %s22
      %p26 = pneg %p20
      %p27 = scmp.eq.s32.totalorder %s11, 1
      %p28 = por %p26, %p27
      %p29 = scmp.ne.s32.totalorder %s21, %s24
      %p30 = scmp.eq.s32.totalorder %s11, 0
      %p31 = por %p29, %p30
      %p32 = scmp.ne.s32.totalorder %s21, %s24
      %p33 = scmp.eq.s32.totalorder %s16, 1
      %p34 = por %p32, %p33
      %p35 = scmp.ne.s32.totalorder %s24, %s25
      %p36 = scmp.eq.s32.totalorder %s16, 0
      %p37 = por %p35, %p36
      %p38 = scmp.ne.s32.totalorder %s24, %s25
      %p39 = scmp.eq.s32.totalorder %s17, 1
      %p40 = por %p38, %p39
      %p42 = scmp.ne.s32.totalorder %s25, %s41
      %p43 = scmp.eq.s32.totalorder %s17, 0
      %p44 = por %p42, %p43
      %s46 = sadd.s32 %s45, 1
      %p49 = scmp.eq.s32.totalorder %s11, 1
      %p50 = scmp.ne.s32.totalorder %s45, %s47
      %p51 = scmp.eq.s32.totalorder %s11, 0
      %p52 = por %p50, %p51
      %p53 = scmp.ne.s32.totalorder %s45, %s47
      %p54 = scmp.eq.s32.totalorder %s16, 1
      %p55 = por %p53, %p54
      %p56 = scmp.ne.s32.totalorder %s47, %s48
      %p57 = scmp.eq.s32.totalorder %s16, 0
      %p58 = por %p56, %p57
      %p59 = scmp.ne.s32.totalorder %s47, %s48
      %p60 = scmp.eq.s32.totalorder %s17, 1
      %p61 = por %p59, %p60
      %p63 = scmp.ne.s32.totalorder %s48, %s62
      %p64 = scmp.eq.s32.totalorder %s17, 0
      %p65 = por %p63, %p64
      %s66 = ssub.s32 %s11, %s18
      %p67 = scmp.eq.s32.totalorder %s66, 0
      %s69 = sadd.s32 %s68, 1
      %s70 = scalar_select %p67, %s68, %s69
      %p73 = pneg %p67
      %p74 = scmp.eq.s32.totalorder %s11, 1
      %p75 = por %p73, %p74
      %p76 = scmp.ne.s32.totalorder %s68, %s71
      %p77 = scmp.eq.s32.totalorder %s11, 0
      %p78 = por %p76, %p77
      %p79 = scmp.ne.s32.totalorder %s68, %s71
      %p80 = scmp.eq.s32.totalorder %s16, 1
      %p81 = por %p79, %p80
      %p82 = scmp.ne.s32.totalorder %s71, %s72
      %p83 = scmp.eq.s32.totalorder %s16, 0
      %p84 = por %p82, %p83
      %p85 = scmp.ne.s32.totalorder %s71, %s72
      %p86 = scmp.eq.s32.totalorder %s17, 1
      %p87 = por %p85, %p86
      %p89 = scmp.ne.s32.totalorder %s72, %s88
      %p90 = scmp.eq.s32.totalorder %s17, 0
      %p91 = por %p89, %p90
      %p92 = scmp.le.s32.totalorder 1, %s11
      %p93 = scmp.lt.s32.totalorder %s11, 3
      %p94 = pnand %p92, %p93
      %p95 = pneg %p94
      // Predicated region
      $region9: #{resgcn_block.2} parent=5 // pred_check
        _
      $region10: #{resgcn_block.2} parent=5 // pred_check_branch
        %97 = sbr.rel (%p94) target = $region12
      $region11: #{resgcn_block.2} parent=5 // pred_region
        %s98 = ssub.s32 %s11, 1
        // Predicated region
        $region13: #{resgcn_block.2} parent=11 // pred_check
          %p99 = pneg %p58
        $region14: #{resgcn_block.2} parent=11 // pred_check_branch
          %101 = sbr.rel (%p99) target = $region16
        $region15: #{resgcn_block.2} parent=11 // pred_region
          _
        $region16: #{resgcn_block.2} parent=11 // pred_fallthru
          _
      $region12: #{resgcn_block.2} parent=5 // pred_fallthru
        _
      %p102 = scmp.lt.s32.totalorder %s11, 2
      // Predicated region
      $region17: #{resgcn_block.2} parent=5 // pred_check
        %p103 = pneg %p102
      $region18: #{resgcn_block.2} parent=5 // pred_check_branch
        %105 = sbr.rel (%p103) target = $region20
      $region19: #{resgcn_block.2} parent=5 // pred_region
        // Predicated region
        $region21: #{resgcn_block.2} parent=19 // pred_check
          %p106 = pneg %p31
        $region22: #{resgcn_block.2} parent=19 // pred_check_branch
          %108 = sbr.rel (%p106) target = $region24
        $region23: #{resgcn_block.2} parent=19 // pred_region
          %s109 = smul.u32 16, %s11
          %p110 = scmp.lt.s32.totalorder %s109, 31
          %s111 = scalar_select %p110, %s109, 31
          %s112 = smul.addr %s111, 8
          %s113 = scalar_lea.vmem %s0, %s112
          %s114 = smul.u32 16, %s11
        $region24: #{resgcn_block.2} parent=19 // pred_fallthru
          _
      $region20: #{resgcn_block.2} parent=5 // pred_fallthru
        _
      %p115 = scmp.le.s32.totalorder 1, %s11
      %p116 = scmp.lt.s32.totalorder %s11, 3
      %p117 = pnand %p115, %p116
      %p118 = pneg %p117
      // Predicated region
      $region25: #{resgcn_block.2} parent=5 // pred_check
        _
      $region26: #{resgcn_block.2} parent=5 // pred_check_branch
        %120 = sbr.rel (%p117) target = $region28
      $region27: #{resgcn_block.2} parent=5 // pred_region
        %s121 = ssub.s32 %s11, 1
        %s122 = smul.u32 16, %s16
        %p123 = scmp.lt.s32.totalorder %s122, 31
        %s124 = scalar_select %p123, %s122, 31
        %s125 = smul.addr %s124, 8
        %s126 = scalar_lea.vmem %s0, %s125
        %p127 = pneg %p37
        %p128 = pneg %p34
        %p129 = pneg %p58
        %p130 = pneg %p55
        %p131 = pneg %p84
        %p132 = pneg %p81
        %s133 = sand.u32 %s71, 1
        %s134 = scalar_lea.sflag [#allocation3], %s133
        %s135 = sand.u32 %s71, 1
        %s136 = smul.addr %s135, 64
        %s137 = scalar_lea.vmem [#allocation2], %s136
        %s138 = smul.u32 16, %s16
        %p139 = scmp.lt.s32.totalorder %s138, 31
        %s140 = scalar_select %p139, %s138, 31
        %s141 = smul.addr %s140, 8
        %s142 = scalar_lea.vmem %s0, %s141
        %s143 = smul.u32 16, %s16
        %s144 = smul.u32 16, %s16
        %v145 = vld [vmem:[%s142] sm:$0xff]
        %v146 = vld [vmem:[%s142 + $0x8] sm:$0xff]
        %v147 = vld [vmem:[%s142 + $0x10] sm:$0xff]
        %v148 = vld [vmem:[%s142 + $0x18] sm:$0xff]
        %v149 = vld [vmem:[%s142 + $0x20] sm:$0xff]
        %v150 = vld [vmem:[%s142 + $0x28] sm:$0xff]
        %v151 = vld [vmem:[%s142 + $0x30] sm:$0xff]
        %v152 = vld [vmem:[%s142 + $0x38] sm:$0xff]
        %v153 = vld [vmem:[%s142 + $0x40] sm:$0xff]
        %v154 = vld [vmem:[%s142 + $0x48] sm:$0xff]
        %v155 = vld [vmem:[%s142 + $0x50] sm:$0xff]
        %v156 = vld [vmem:[%s142 + $0x58] sm:$0xff]
        %v157 = vld [vmem:[%s142 + $0x60] sm:$0xff]
        %v158 = vld [vmem:[%s142 + $0x68] sm:$0xff]
        %v159 = vld [vmem:[%s142 + $0x70] sm:$0xff]
        %v160 = vld [vmem:[%s142 + $0x78] sm:$0xff]
        %v161 = vld [vmem:[%s1] sm:$0xff]
        %v162 = vld [vmem:[%s1 + $0x8] sm:$0xff]
        %v163 = vld [vmem:[%s1 + $0x10] sm:$0xff]
        %v164 = vld [vmem:[%s1 + $0x18] sm:$0xff]
        %v165 = vld [vmem:[%s1 + $0x20] sm:$0xff]
        %v166 = vld [vmem:[%s1 + $0x28] sm:$0xff]
        %v167 = vld [vmem:[%s1 + $0x30] sm:$0xff]
        %v168 = vld [vmem:[%s1 + $0x38] sm:$0xff]
        %v169 = vld [vmem:[%s1 + $0x40] sm:$0xff]
        %v170 = vld [vmem:[%s1 + $0x48] sm:$0xff]
        %v171 = vld [vmem:[%s1 + $0x50] sm:$0xff]
        %v172 = vld [vmem:[%s1 + $0x58] sm:$0xff]
        %v173 = vld [vmem:[%s1 + $0x60] sm:$0xff]
        %v174 = vld [vmem:[%s1 + $0x68] sm:$0xff]
        %v175 = vld [vmem:[%s1 + $0x70] sm:$0xff]
        %v176 = vld [vmem:[%s1 + $0x78] sm:$0xff]
        %177 = vmatprep.subr.mxu0 0.0
        %178 = vmatpush1.msra.mxu0 %v161
        %179 = vmatprep.subr.mxu0 0.0
        %180 = vmatpush1.msra.mxu0 %v162
        %181 = vmatprep.subr.mxu0 0.0
        %182 = vmatpush1.msra.mxu0 %v163
        %183 = vmatprep.subr.mxu0 0.0
        %184 = vmatpush1.msra.mxu0 %v164
        %185 = vmatprep.subr.mxu0 0.0
        %186 = vmatpush1.msra.mxu0 %v165
        %187 = vmatprep.subr.mxu0 0.0
        %188 = vmatpush1.msra.mxu0 %v166
        %189 = vmatprep.subr.mxu0 0.0
        %190 = vmatpush1.msra.mxu0 %v167
        %191 = vmatprep.subr.mxu0 0.0
        %192 = vmatpush1.msra.mxu0 %v168
        %193 = vmatprep.subr.mxu0 0.0
        %194 = vmatpush1.msra.mxu0 %v169
        %195 = vmatprep.subr.mxu0 0.0
        %196 = vmatpush1.msra.mxu0 %v170
        %197 = vmatprep.subr.mxu0 0.0
        %198 = vmatpush1.msra.mxu0 %v171
        %199 = vmatprep.subr.mxu0 0.0
        %200 = vmatpush1.msra.mxu0 %v172
        %201 = vmatprep.subr.mxu0 0.0
        %202 = vmatpush1.msra.mxu0 %v173
        %203 = vmatprep.subr.mxu0 0.0
        %204 = vmatpush1.msra.mxu0 %v174
        %205 = vmatprep.subr.mxu0 0.0
        %206 = vmatpush1.msra.mxu0 %v175
        %207 = vmatprep.subr.mxu0 0.0
        %208 = vmatpush1.msra.mxu0 %v176
        %209 = vmatprep.subr.mxu0 0.0
        %210 = vmatpush1.msra.mxu0 0.0
        %211 = vmatprep.subr.mxu0 0.0
        %212 = vmatpush1.msra.mxu0 0.0
        %213 = vmatprep.subr.mxu0 0.0
        %214 = vmatpush1.msra.mxu0 0.0
        %215 = vmatprep.subr.mxu0 0.0
        %216 = vmatpush1.msra.mxu0 0.0
        %217 = vmatprep.subr.mxu0 0.0
        %218 = vmatpush1.msra.mxu0 0.0
        %219 = vmatprep.subr.mxu0 0.0
        %220 = vmatpush1.msra.mxu0 0.0
        %221 = vmatprep.subr.mxu0 0.0
        %222 = vmatpush1.msra.mxu0 0.0
        %223 = vmatprep.subr.mxu0 0.0
        %224 = vmatpush1.msra.mxu0 0.0
        %225 = vmatprep.subr.mxu0 0.0
        %226 = vmatpush1.msra.mxu0 0.0
        %227 = vmatprep.subr.mxu0 0.0
        %228 = vmatpush1.msra.mxu0 0.0
        %229 = vmatprep.subr.mxu0 0.0
        %230 = vmatpush1.msra.mxu0 0.0
        %231 = vmatprep.subr.mxu0 0.0
        %232 = vmatpush1.msra.mxu0 0.0
        %233 = vmatprep.subr.mxu0 0.0
        %234 = vmatpush1.msra.mxu0 0.0
        %235 = vmatprep.subr.mxu0 0.0
        %236 = vmatpush1.msra.mxu0 0.0
        %237 = vmatprep.subr.mxu0 0.0
        %238 = vmatpush1.msra.mxu0 0.0
        %239 = vmatprep.subr.mxu0 0.0
        %240 = vmatpush1.msra.mxu0 0.0
        %241 = vmatprep.mubr.f32.mxu0 0.0
        %242 = vmatmul.mubr.f32.gmra.mrb[0].mxu0 %v145
        %v243 = vpop.f32.mrb[0].mxu0
        %v244 = vadd.f32 0.0, %v243
        %v245 = vpop.f32.mrb[0].mxu0
        %246 = vmatprep.mubr.f32.mxu0 0.0
        %247 = vmatmul.mubr.f32.gmra.mrb[0].mxu0 %v146
        %v248 = vpop.f32.mrb[0].mxu0
        %v249 = vadd.f32 0.0, %v248
        %v250 = vpop.f32.mrb[0].mxu0
        %251 = vmatprep.mubr.f32.mxu0 0.0
        %252 = vmatmul.mubr.f32.gmra.mrb[0].mxu0 %v147
        %v253 = vpop.f32.mrb[0].mxu0
        %v254 = vadd.f32 0.0, %v253
        %v255 = vpop.f32.mrb[0].mxu0
        %256 = vmatprep.mubr.f32.mxu0 0.0
        %257 = vmatmul.mubr.f32.gmra.mrb[0].mxu0 %v148
        %v258 = vpop.f32.mrb[0].mxu0
        %v259 = vadd.f32 0.0, %v258
        %v260 = vpop.f32.mrb[0].mxu0
        %261 = vmatprep.mubr.f32.mxu0 0.0
        %262 = vmatmul.mubr.f32.gmra.mrb[0].mxu0 %v149
        %v263 = vpop.f32.mrb[0].mxu0
        %v264 = vadd.f32 0.0, %v263
        %v265 = vpop.f32.mrb[0].mxu0
        %266 = vmatprep.mubr.f32.mxu0 0.0
        %267 = vmatmul.mubr.f32.gmra.mrb[0].mxu0 %v150
        %v268 = vpop.f32.mrb[0].mxu0
        %v269 = vadd.f32 0.0, %v268
        %v270 = vpop.f32.mrb[0].mxu0
        %271 = vmatprep.mubr.f32.mxu0 0.0
        %272 = vmatmul.mubr.f32.gmra.mrb[0].mxu0 %v151
        %v273 = vpop.f32.mrb[0].mxu0
        %v274 = vadd.f32 0.0, %v273
        %v275 = vpop.f32.mrb[0].mxu0
        %276 = vmatprep.mubr.f32.mxu0 0.0
        %277 = vmatmul.mubr.f32.gmra.mrb[0].mxu0 %v152
        %v278 = vpop.f32.mrb[0].mxu0
        %v279 = vadd.f32 0.0, %v278
        %v280 = vpop.f32.mrb[0].mxu0
        %281 = vmatprep.mubr.f32.mxu0 0.0
        %282 = vmatmul.mubr.f32.gmra.mrb[0].mxu0 %v153
        %v283 = vpop.f32.mrb[0].mxu0
        %v284 = vadd.f32 0.0, %v283
        %v285 = vpop.f32.mrb[0].mxu0
        %286 = vmatprep.mubr.f32.mxu0 0.0
        %287 = vmatmul.mubr.f32.gmra.mrb[0].mxu0 %v154
        %v288 = vpop.f32.mrb[0].mxu0
        %v289 = vadd.f32 0.0, %v288
        %v290 = vpop.f32.mrb[0].mxu0
        %291 = vmatprep.mubr.f32.mxu0 0.0
        %292 = vmatmul.mubr.f32.gmra.mrb[0].mxu0 %v155
        %v293 = vpop.f32.mrb[0].mxu0
        %v294 = vadd.f32 0.0, %v293
        %v295 = vpop.f32.mrb[0].mxu0
        %296 = vmatprep.mubr.f32.mxu0 0.0
        %297 = vmatmul.mubr.f32.gmra.mrb[0].mxu0 %v156
        %v298 = vpop.f32.mrb[0].mxu0
        %v299 = vadd.f32 0.0, %v298
        %v300 = vpop.f32.mrb[0].mxu0
        %301 = vmatprep.mubr.f32.mxu0 0.0
        %302 = vmatmul.mubr.f32.gmra.mrb[0].mxu0 %v157
        %v303 = vpop.f32.mrb[0].mxu0
        %v304 = vadd.f32 0.0, %v303
        %v305 = vpop.f32.mrb[0].mxu0
        %306 = vmatprep.mubr.f32.mxu0 0.0
        %307 = vmatmul.mubr.f32.gmra.mrb[0].mxu0 %v158
        %v308 = vpop.f32.mrb[0].mxu0
        %v309 = vadd.f32 0.0, %v308
        %v310 = vpop.f32.mrb[0].mxu0
        %311 = vmatprep.mubr.f32.mxu0 0.0
        %312 = vmatmul.mubr.f32.gmra.mrb[0].mxu0 %v159
        %v313 = vpop.f32.mrb[0].mxu0
        %v314 = vadd.f32 0.0, %v313
        %v315 = vpop.f32.mrb[0].mxu0
        %316 = vmatprep.mubr.f32.mxu0 0.0
        %317 = vmatmul.mubr.f32.gmra.mrb[0].mxu0 %v160
        %v318 = vpop.f32.mrb[0].mxu0
        %v319 = vadd.f32 0.0, %v318
        %v320 = vpop.f32.mrb[0].mxu0
        %321 = vdwg.mxu0
        %v322 = vpack.c.bf16 %v249, %v244
        %v323 = vpack.c.bf16 %v259, %v254
        %v324 = vpack.c.bf16 %v269, %v264
        %v325 = vpack.c.bf16 %v279, %v274
        %v326 = vpack.c.bf16 %v289, %v284
        %v327 = vpack.c.bf16 %v299, %v294
        %v328 = vpack.c.bf16 %v309, %v304
        %v329 = vpack.c.bf16 %v319, %v314
        %v338 = vunpack.c.l.b16 %v322
        %v339 = vunpack.c.h.b16 %v322
        %v340 = vunpack.c.l.b16 %v323
        %v341 = vunpack.c.h.b16 %v323
        %v342 = vunpack.c.l.b16 %v324
        %v343 = vunpack.c.h.b16 %v324
        %v344 = vunpack.c.l.b16 %v325
        %v345 = vunpack.c.h.b16 %v325
        %v346 = vunpack.c.l.b16 %v326
        %v347 = vunpack.c.h.b16 %v326
        %v348 = vunpack.c.l.b16 %v327
        %v349 = vunpack.c.h.b16 %v327
        %v350 = vunpack.c.l.b16 %v328
        %v351 = vunpack.c.h.b16 %v328
        %v352 = vunpack.c.l.b16 %v329
        %v353 = vunpack.c.h.b16 %v329
        %v354 = vpack.c.b16 %v338, %v338
        %v355 = vpack.c.b16 %v339, %v339
        %v356 = vpack.c.b16 %v340, %v340
        %v357 = vpack.c.b16 %v341, %v341
        %v358 = vpack.c.b16 %v342, %v342
        %v359 = vpack.c.b16 %v343, %v343
        %v360 = vpack.c.b16 %v344, %v344
        %v361 = vpack.c.b16 %v345, %v345
        %v362 = vpack.c.b16 %v346, %v346
        %v363 = vpack.c.b16 %v347, %v347
        %v364 = vpack.c.b16 %v348, %v348
        %v365 = vpack.c.b16 %v349, %v349
        %v366 = vpack.c.b16 %v350, %v350
        %v367 = vpack.c.b16 %v351, %v351
        %v368 = vpack.c.b16 %v352, %v352
        %v369 = vpack.c.b16 %v353, %v353
        %386 = vst [vmem:[%s137] sm:$0xf] %v354
        %387 = vst [vmem:[%s137 + $0x4] sm:$0xf] %v355
        %388 = vst [vmem:[%s137 + $0x8] sm:$0xf] %v356
        %389 = vst [vmem:[%s137 + $0xc] sm:$0xf] %v357
        %390 = vst [vmem:[%s137 + $0x10] sm:$0xf] %v358
        %391 = vst [vmem:[%s137 + $0x14] sm:$0xf] %v359
        %392 = vst [vmem:[%s137 + $0x18] sm:$0xf] %v360
        %393 = vst [vmem:[%s137 + $0x1c] sm:$0xf] %v361
        %394 = vst [vmem:[%s137 + $0x20] sm:$0xf] %v362
        %395 = vst [vmem:[%s137 + $0x24] sm:$0xf] %v363
        %396 = vst [vmem:[%s137 + $0x28] sm:$0xf] %v364
        %397 = vst [vmem:[%s137 + $0x2c] sm:$0xf] %v365
        %398 = vst [vmem:[%s137 + $0x30] sm:$0xf] %v366
        %399 = vst [vmem:[%s137 + $0x34] sm:$0xf] %v367
        %400 = vst [vmem:[%s137 + $0x38] sm:$0xf] %v368
        %401 = vst [vmem:[%s137 + $0x3c] sm:$0xf] %v369
        %s402 = sand.u32 %s71, 1
        %s403 = scalar_lea.sflag [#allocation3], %s402
        %s404 = sand.u32 %s71, 1
        %s405 = smul.addr %s404, 64
        %s406 = scalar_lea.vmem [#allocation2], %s405
        // Predicated region
        $region29: #{resgcn_block.2} parent=27 // pred_check
          %p407 = pneg %p81
        $region30: #{resgcn_block.2} parent=27 // pred_check_branch
          %409 = sbr.rel (%p407) target = $region32
        $region31: #{resgcn_block.2} parent=27 // pred_region
          %s410 = smul.u32 16, %s16
          %s412 = ssub.s32 1024, 1024
          %413 = vsyncadd %s403, %s412
          %s414 = smul.addr %s410, 64
          %s415 = scalar_lea.hbm %s2, %s414
          %s416 = sshll.u32 %s406, 4
          %s417 = int_to_ptr.vmem [resolvable:$true] %s416
          %422 = dma.vmem_to_hbm [thread:$0]  %s417, 1024, %s415, %s403, 64, 64, 4
        $region32: #{resgcn_block.2} parent=27 // pred_fallthru
          _
      $region28: #{resgcn_block.2} parent=5 // pred_fallthru
        _
      %p423 = scmp.le.s32.totalorder 2, %s11
      // Predicated region
      $region33: #{resgcn_block.2} parent=5 // pred_check
        %p424 = pneg %p423
      $region34: #{resgcn_block.2} parent=5 // pred_check_branch
        %426 = sbr.rel (%p424) target = $region36
      $region35: #{resgcn_block.2} parent=5 // pred_region
        %s427 = ssub.s32 %s11, 2
        // Predicated region
        $region37: #{resgcn_block.2} parent=35 // pred_check
          %p428 = pneg %p87
        $region38: #{resgcn_block.2} parent=35 // pred_check_branch
          %430 = sbr.rel (%p428) target = $region40
        $region39: #{resgcn_block.2} parent=35 // pred_region
          %s431 = sand.u32 %s72, 1
          %s432 = scalar_lea.sflag [#allocation3], %s431
          %s433 = sand.u32 %s72, 1
          %s434 = smul.addr %s433, 64
          %s435 = scalar_lea.vmem [#allocation2], %s434
          %436 = dma.done %s432, 1024
        $region40: #{resgcn_block.2} parent=35 // pred_fallthru
          _
      $region36: #{resgcn_block.2} parent=5 // pred_fallthru
        _
    $region6: #{resgcn_block.2} parent=1 // loop_footer
      %s15 = sadd.s32 1, %s11
    $region7: #{resgcn_block.2} parent=1 // loop_footer_branch
      %10 = sbr.rel target = $region3
    $region8: #{resgcn_block.2} parent=1 // loop_exit
      _
    %437 = vsyncpa [#allocation3], 1
    %s438 = scalar_lea.sflag [#allocation3], 1
    %439 = vsyncpa %s438, 1

</llo_original>
